<compile_context>
chip_gen: v7x
topology: tpu7x:2x2x1
jax: 0.10.0
libtpu: 0.0.40
codegen_flags: <defaults>
</compile_context>

<pallas_src>
import functools
import math

import jax
import jax.numpy as jnp
from jax.experimental import pallas as pl
from jax.experimental.pallas import tpu as pltpu


def attention_kernel(hidp_ref, enc_ref, we_ref, v_ref, out_ref, *,
                     s_pad, s_valid, matmul_dtype, tanh_dtype):
    # hidp_ref: (TB, H)        f32   precomputed hidden @ Wh + bias (hoisted to XLA)
    # enc_ref:  (TB*S_pad, H)  f32   encoder rows for this batch tile, flattened
    # we_ref:   (H, H)         bf16/f32  encoder half of the concat-linear weight
    # v_ref:    (1, H)         f32   scoring vector (Linear(H,1,bias=False).weight)
    # out_ref:  (TB, S_pad)    f32   softmax attention weights
    tb, h = hidp_ref.shape

    # In-VMEM cast to the MXU dtype (no wrapper-side HBM round trip for the cast).
    enc = enc_ref[...].astype(matmul_dtype)                               # (TB*S_pad, H)

    # One MXU-shaped matmul over all TB*S_pad encoder rows in this tile.
    proj = jnp.dot(enc, we_ref[...], preferred_element_type=tanh_dtype)   # (TB*S_pad, H)

    # S_pad % 8 == 0 -> this reshape is layout-preserving (no VMEM relayout copy).
    proj = proj.reshape(tb, s_pad, h)                                     # (TB, S_pad, H)

    # Broadcast-add + tanh in tanh_dtype (bf16 fast path on v6e/v7x, f32 exact path).
    hidp = hidp_ref[...].astype(tanh_dtype)
    energy = jnp.tanh(proj + hidp[:, None, :])                            # EUP tanh

    # scores[b, t] = energy[b, t, :] . v  -- VPU multiply + XLU lane reduce, f32 accumulate.
    scores = jnp.sum(energy.astype(jnp.float32) * v_ref[...], axis=-1)    # (TB, S_pad) f32

    # Mask padded time steps (enc rows were zero-padded) so softmax ignores them.
    if s_valid != s_pad:
        col = jax.lax.broadcasted_iota(jnp.int32, scores.shape, 1)
        scores = jnp.where(col < s_valid, scores, -1e30)

    # Row-wise softmax over S, vectorized across the TB rows.  Exact division so
    # every row sums to 1 to f32 precision (approx reciprocal broke this before).
    m = jnp.max(scores, axis=-1, keepdims=True)                           # (TB, 1)
    e = jnp.exp(scores - m)
    denom = jnp.sum(e, axis=-1, keepdims=True)                            # (TB, 1)
    out_ref[...] = (e / denom).astype(out_ref.dtype)


def _round_up(x, m):
    return ((x + m - 1) // m) * m


def _pick_tiling(B, S_pad, H, block_b, vmem_budget_bytes):
    """Pick (TB, n_steps) for the batch grid axis.

    Per-step VMEM accounting (per lane-padded element, H rounded up to 128):
      2 x f32 encoder input block (double-buffered)   : 8 B
      bf16 in-kernel copy of the encoder block        : 2 B
      proj / energy intermediate (<= f32)             : 4 B
    ~14 B/elem total; small extras (hid_proj, scores, output) fit in the slack.
    The 12 MiB default budget keeps the whole pipeline under v5e's 16 MiB scoped
    VMEM default and well under v6e/v7x's 32 MiB.
    """
    h_lane = _round_up(H, 128)                      # 128-lane padding for H < 128
    bytes_per_row = S_pad * h_lane * (2 * 4 + 2 + 4)
    tb_budget = max(8, (vmem_budget_bytes // max(1, bytes_per_row)) // 8 * 8)
    # TODO(synk): add an S-tile grid axis with a two-pass/online softmax for very
    # long encoder sequences where even an 8-row batch block exceeds the budget.

    if block_b is not None:
        tb = max(8, _round_up(block_b, 8))
        n_steps = max(1, math.ceil(B / tb))
        return tb, n_steps

    # Always >= 2 grid steps: enables DMA/compute overlap via double-buffering
    # and lets the "parallel" batch axis shard across both v7x TensorCores.
    n_steps = max(2, math.ceil(_round_up(B, 8) / tb_budget))
    tb = _round_up(math.ceil(B / n_steps), 8)
    return tb, n_steps


def attention_forward(hidden, encoder_outputs, attn_weight, attn_bias, v_weight,
                      *, matmul_dtype=jnp.bfloat16, tanh_dtype=None,
                      block_b=None, vmem_budget_bytes=12 * 1024 * 1024,
                      vmem_limit_bytes=None):
    """
    hidden:          (1, B, H)  float32
    encoder_outputs: (B, S, H)  float32
    attn_weight:     (H, 2H)    (PyTorch nn.Linear(2H, H).weight)
    attn_bias:       (H,)
    v_weight:        (1, H)     (PyTorch nn.Linear(H, 1, bias=False).weight)
    returns:         (B, S)     softmax attention weights over S

    matmul_dtype: dtype of the MXU operands (bf16 fast path / f32 exact path).
    tanh_dtype:   dtype of the broadcast-add + tanh; defaults to matmul_dtype.
                  Use jnp.float32 on v5e (its VPU/EUP lack bf16 support).
    """
    B, S, H = encoder_outputs.shape
    matmul_dtype = jnp.dtype(matmul_dtype)
    tanh_dtype = matmul_dtype if tanh_dtype is None else jnp.dtype(tanh_dtype)

    # ---- glue + hoisted hidden projection (one XLA matmul, not B tiny in-kernel ones)
    hid = hidden[0].astype(jnp.float32)                 # (1,B,H) -> (B,H) (== permute+squeeze)
    w_t = attn_weight.T                                 # (2H, H); concat order is [hidden, encoder]
    w_h = w_t[:H, :].astype(jnp.float32)                # hidden half of the concat-linear
    w_e = w_t[H:, :].astype(matmul_dtype)               # encoder half (tiny (H,H): cast is cheap)
    hid_proj = hid @ w_h + attn_bias.astype(jnp.float32)[None, :]        # (B, H) f32
    v_row = v_weight.reshape(1, H).astype(jnp.float32)

    # ---- padding / tiling
    S_pad = _round_up(S, 8)                             # layout-preserving in-kernel reshape
    TB, n_steps = _pick_tiling(B, S_pad, H, block_b, vmem_budget_bytes)
    B_pad = n_steps * TB

    if B_pad != B or S_pad != S:
        # Padded rows/steps are zero; padded time steps are masked in-kernel,
        # padded batch rows are sliced off below.
        encoder_outputs = jnp.pad(
            encoder_outputs, ((0, B_pad - B), (0, S_pad - S), (0, 0)))
    if B_pad != B:
        hid_proj = jnp.pad(hid_proj, ((0, B_pad - B), (0, 0)))

    # Encoder streamed as f32 (no per-call wrapper-side bf16 cast -> no extra HBM
    # round trip); bf16 cast happens in VMEM right before the dot.
    enc_flat = encoder_outputs.astype(jnp.float32).reshape(B_pad * S_pad, H)

    kernel = functools.partial(
        attention_kernel, s_pad=S_pad, s_valid=S,
        matmul_dtype=matmul_dtype, tanh_dtype=tanh_dtype)

    grid_spec = pltpu.PrefetchScalarGridSpec(
        num_scalar_prefetch=0,
        grid=(n_steps,),
        in_specs=[
            pl.BlockSpec((TB, H), lambda i: (i, 0)),            # hidden projection block
            pl.BlockSpec((TB * S_pad, H), lambda i: (i, 0)),    # flattened f32 encoder rows
            pl.BlockSpec((H, H), lambda i: (0, 0)),             # W_e: constant -> VMEM resident
            pl.BlockSpec((1, H), lambda i: (0, 0)),             # v
        ],
        out_specs=pl.BlockSpec((TB, S_pad), lambda i: (i, 0)),  # (TB,S_pad) output slab
    )

    out = pl.pallas_call(
        kernel,
        out_shape=jax.ShapeDtypeStruct((B_pad, S_pad), jnp.float32),
        grid_spec=grid_spec,
        compiler_params=pltpu.CompilerParams(
            dimension_semantics=("parallel",),                  # batch tiles across TCs (v7x)
            vmem_limit_bytes=vmem_limit_bytes,
        ),
    )(hid_proj, enc_flat, w_e, v_row)

    return out[:B, :S]


def attention_reference(hidden, encoder_outputs, attn_weight, attn_bias, v_weight):
    """Pure-JAX mirror of the PyTorch forward, for validation."""
    h = jnp.transpose(hidden, (1, 0, 2))                       # (B, 1, H)
    S = encoder_outputs.shape[1]
    h_rep = jnp.repeat(h, S, axis=1)                           # (B, S, H)
    cat = jnp.concatenate([h_rep, encoder_outputs], axis=2)    # (B, S, 2H)
    energy = jnp.tanh(cat @ attn_weight.T + attn_bias)         # (B, S, H)
    attention = (energy @ v_weight.T)[..., 0]                  # (B, S)
    return jax.nn.softmax(attention, axis=1)


if __name__ == "__main__":
    B, S, H = 2, 8, 32

    key = jax.random.PRNGKey(0)
    k1, k2, k3, k4, k5 = jax.random.split(key, 5)

    hidden = jax.random.normal(k1, (1, B, H), dtype=jnp.float32)
    encoder_outputs = jax.random.normal(k2, (B, S, H), dtype=jnp.float32)
    attn_weight = jax.random.normal(k3, (H, 2 * H), dtype=jnp.float32) * 0.1
    attn_bias = jax.random.normal(k4, (H,), dtype=jnp.float32) * 0.1
    v_weight = jax.random.normal(k5, (1, H), dtype=jnp.float32) * 0.1

    ref = attention_reference(hidden, encoder_outputs, attn_weight, attn_bias, v_weight)

    # Exact path: f32 matmul + f32 tanh -> tight tolerance.
    out_f32 = attention_forward(hidden, encoder_outputs, attn_weight, attn_bias,
                                v_weight, matmul_dtype=jnp.float32)
    out_f32 = jax.block_until_ready(out_f32)
    assert out_f32.shape == (B, S)
    assert jnp.allclose(out_f32, ref, atol=1e-4, rtol=1e-4), "f32 Pallas output mismatch vs reference"
    assert jnp.allclose(jnp.sum(out_f32, axis=1), 1.0, atol=1e-5)

    # Default fast path: bf16 MXU operands + bf16 tanh (v6e/v7x), f32 softmax, exact division.
    out_fast = attention_forward(hidden, encoder_outputs, attn_weight, attn_bias, v_weight)
    out_fast = jax.block_until_ready(out_fast)
    assert out_fast.shape == (B, S)
    assert jnp.allclose(out_fast, ref, atol=3e-2, rtol=3e-2), "bf16 Pallas output mismatch vs reference"
    assert jnp.allclose(jnp.sum(out_fast, axis=1), 1.0, atol=1e-3)

    # Multi-tile + batch-padding path: user block, B not a multiple of the tile, grid > 1.
    B2 = 12
    kb1, kb2 = jax.random.split(jax.random.PRNGKey(1), 2)
    hidden2 = jax.random.normal(kb1, (1, B2, H), dtype=jnp.float32)
    enc2 = jax.random.normal(kb2, (B2, S, H), dtype=jnp.float32)
    ref2 = attention_reference(hidden2, enc2, attn_weight, attn_bias, v_weight)
    out2 = attention_forward(hidden2, enc2, attn_weight, attn_bias, v_weight,
                             matmul_dtype=jnp.float32, block_b=8)
    out2 = jax.block_until_ready(out2)
    assert out2.shape == (B2, S)
    assert jnp.allclose(out2, ref2, atol=1e-4, rtol=1e-4), "padded/multi-tile mismatch vs reference"

    # Ragged-S path: S not a multiple of 8 -> padded time steps masked before softmax.
    B3, S3 = 4, 10
    kc1, kc2 = jax.random.split(jax.random.PRNGKey(2), 2)
    hidden3 = jax.random.normal(kc1, (1, B3, H), dtype=jnp.float32)
    enc3 = jax.random.normal(kc2, (B3, S3, H), dtype=jnp.float32)
    ref3 = attention_reference(hidden3, enc3, attn_weight, attn_bias, v_weight)
    out3 = attention_forward(hidden3, enc3, attn_weight, attn_bias, v_weight,
                             matmul_dtype=jnp.float32)
    out3 = jax.block_until_ready(out3)
    assert out3.shape == (B3, S3)
    assert jnp.allclose(out3, ref3, atol=1e-4, rtol=1e-4), "masked-S mismatch vs reference"
    assert jnp.allclose(jnp.sum(out3, axis=1), 1.0, atol=1e-5)

    print("KERNEL_OK")
</pallas_src>

<mosaic_0001>
module attributes {stable_mosaic.version = 11 : i64} {
  func.func @attention_kernel(%arg0: i32, %arg1: memref<8x32xf32, #tpu.memory_space<vmem>>, %arg2: memref<64x32xf32, #tpu.memory_space<vmem>>, %arg3: memref<32x32xf32, #tpu.memory_space<vmem>>, %arg4: memref<1x32xf32, #tpu.memory_space<vmem>>, %arg5: memref<8x8xf32, #tpu.memory_space<vmem>>) attributes {dimension_semantics = [#tpu.dimension_semantics<parallel>], iteration_bounds = array<i64: 2>, scalar_prefetch = 0 : i64, scratch_operands = 0 : i64, tpu.core_type = #tpu.core_type<tc>, window_params = [{transform_indices = @transform_0, window_bounds = array<i64: 8, 32>}, {transform_indices = @transform_1, window_bounds = array<i64: 64, 32>}, {pipeline_mode = #tpu.pipeline_mode<synchronous>, transform_indices = @transform_2, window_bounds = array<i64: 32, 32>}, {pipeline_mode = #tpu.pipeline_mode<synchronous>, transform_indices = @transform_3, window_bounds = array<i64: 1, 32>}, {transform_indices = @transform_4, window_bounds = array<i64: 8, 8>}]} {
    %c0 = arith.constant 0 : index
    %c0_0 = arith.constant 0 : index
    %0 = vector.load %arg2[%c0, %c0_0] : memref<64x32xf32, #tpu.memory_space<vmem>>, vector<64x32xf32>
    %c0_1 = arith.constant 0 : index
    %c0_2 = arith.constant 0 : index
    %1 = vector.load %arg3[%c0_1, %c0_2] : memref<32x32xf32, #tpu.memory_space<vmem>>, vector<32x32xf32>
    %cst = arith.constant dense<0.000000e+00> : vector<64x32xf32>
    %2 = tpu.matmul %0, %1, %cst {dimension_numbers = #tpu.dot_dimension_numbers<[1], [0], [0], [1], [0, 0, 1, 1], [], []>} : vector<64x32xf32>, vector<32x32xf32>, vector<64x32xf32> -> vector<64x32xf32>
    %3 = vector.shape_cast %2 : vector<64x32xf32> to vector<8x8x32xf32>
    %c0_3 = arith.constant 0 : index
    %c0_4 = arith.constant 0 : index
    %4 = vector.load %arg1[%c0_3, %c0_4] : memref<8x32xf32, #tpu.memory_space<vmem>>, vector<8x32xf32>
    %5 = vector.shape_cast %4 : vector<8x32xf32> to vector<8x1x32xf32>
    %6 = vector.broadcast %5 : vector<8x1x32xf32> to vector<8x8x32xf32>
    %7 = arith.addf %3, %6 : vector<8x8x32xf32>
    %8 = math.tanh %7 : vector<8x8x32xf32>
    %c0_5 = arith.constant 0 : index
    %c0_6 = arith.constant 0 : index
    %9 = vector.load %arg4[%c0_5, %c0_6] : memref<1x32xf32, #tpu.memory_space<vmem>>, vector<1x32xf32>
    %10 = vector.shape_cast %9 : vector<1x32xf32> to vector<1x1x32xf32>
    %11 = vector.broadcast %10 : vector<1x1x32xf32> to vector<8x8x32xf32>
    %12 = arith.mulf %8, %11 : vector<8x8x32xf32>
    %cst_7 = arith.constant dense<0.000000e+00> : vector<8x8xf32>
    %13 = vector.multi_reduction <add>, %12, %cst_7 [2] : vector<8x8x32xf32> to vector<8x8xf32>
    %cst_8 = arith.constant dense<0xFF800000> : vector<8xf32>
    %14 = vector.multi_reduction <maximumf>, %13, %cst_8 [1] : vector<8x8xf32> to vector<8xf32>
    %15 = vector.shape_cast %14 : vector<8xf32> to vector<8x1xf32>
    %16 = vector.broadcast %15 : vector<8x1xf32> to vector<8x8xf32>
    %17 = arith.subf %13, %16 : vector<8x8xf32>
    %18 = math.exp %17 : vector<8x8xf32>
    %cst_9 = arith.constant dense<0.000000e+00> : vector<8xf32>
    %19 = vector.multi_reduction <add>, %18, %cst_9 [1] : vector<8x8xf32> to vector<8xf32>
    %20 = vector.shape_cast %19 : vector<8xf32> to vector<8x1xf32>
    %21 = vector.broadcast %20 : vector<8x1xf32> to vector<8x8xf32>
    %22 = arith.divf %18, %21 : vector<8x8xf32>
    %c0_10 = arith.constant 0 : index
    %c0_11 = arith.constant 0 : index
    %23 = vector.load %arg5[%c0_10, %c0_11] : memref<8x8xf32, #tpu.memory_space<vmem>>, vector<8x8xf32>
    tpu.vector_store %arg5[%c0_10, %c0_11], %22 {strides = array<i32>} : memref<8x8xf32, #tpu.memory_space<vmem>>, vector<8x8xf32>,
    return
  }
  func.func @transform_0(%arg0: i32) -> (i32, i32) {
    %c0_i32 = arith.constant 0 : i32
    %c0_i32_0 = arith.constant 0 : i32
    return %arg0, %c0_i32 : i32, i32
  }
  func.func @transform_1(%arg0: i32) -> (i32, i32) {
    %c0_i32 = arith.constant 0 : i32
    %c0_i32_0 = arith.constant 0 : i32
    return %arg0, %c0_i32 : i32, i32
  }
  func.func @transform_2(%arg0: i32) -> (i32, i32) {
    %c0_i32 = arith.constant 0 : i32
    %c0_i32_0 = arith.constant 0 : i32
    %c0_i32_1 = arith.constant 0 : i32
    return %c0_i32, %c0_i32_0 : i32, i32
  }
  func.func @transform_3(%arg0: i32) -> (i32, i32) {
    %c0_i32 = arith.constant 0 : i32
    %c0_i32_0 = arith.constant 0 : i32
    %c0_i32_1 = arith.constant 0 : i32
    return %c0_i32, %c0_i32_0 : i32, i32
  }
  func.func @transform_4(%arg0: i32) -> (i32, i32) {
    %c0_i32 = arith.constant 0 : i32
    %c0_i32_0 = arith.constant 0 : i32
    return %arg0, %c0_i32 : i32, i32
  }
}

</mosaic_0001>

<llo_original>
// kernel: tpu_custom_call.1
$region0: #{tpu_custom_call.1}
  #allocation0 [shape = 'u32[]', space=smem, size = 0x4, offset = 0x4, fixed_abs, tag = 'smem constant byte address 0x4 - core index']
  #allocation1 [shape = 'u32[144,128]{1,0:T(1,128)}', space=vmem, size = 0x12000, scoped, tag = 'internal scratch']
  %s0 = inlined_call_operand.vmem [shape: f32[16,32], index: 0, kind: input, shape index: {}]
  %s1 = inlined_call_operand.vmem [shape: f32[128,32], index: 1, kind: input, shape index: {}]
  %s2 = inlined_call_operand.vmem [shape: f32[32,32], index: 2, kind: input, shape index: {}]
  %s3 = inlined_call_operand.vmem [shape: f32[1,32], index: 3, kind: input, shape index: {}]
  %s4 = inlined_call_operand.vmem [shape: f32[16,8], index: 4, kind: output, shape index: {}]
  %s5 = sld [smem:[#allocation0]]
  $region49: #{tpu_custom_call.1} parent=0
    _
  %s7 = ssub.s32 1, %s5
  %s8 = scalar_select 0, %s7, %s5
  loop: start=0, step=1, limit=4
  $region2: #{tpu_custom_call.1} parent=0 // loop_pre_header
    _
  $region3: #{tpu_custom_call.1} parent=0 // loop_header
    %s10 = sphi 0, %s14
    %p11 = scmp.ge.s32.totalorder %s10, 4
    %s20 = sphi 0, %s22
    %s23 = sphi 0, %s20
    %s24 = sphi 0, %s23
    %s40 = sphi 0, %s24
    %s46 = sphi 0, %s48
    %s49 = sphi 0, %s46
    %s50 = sphi 0, %s49
    %s66 = sphi 0, %s50
    %s70 = sphi 0, %s70
    %s72 = sphi 0, %s70
    %s73 = sphi 0, %s72
    %s87 = sphi 0, %s73
    %s91 = sphi 0, %s91
    %s93 = sphi 0, %s91
    %s94 = sphi 0, %s93
    %s108 = sphi 0, %s94
    %s114 = sphi 0, %s116
    %s117 = sphi 0, %s114
    %s118 = sphi 0, %s117
    %s134 = sphi 0, %s118
  $region4: #{tpu_custom_call.1} parent=0 // loop_header_branch
    %13 = sbr.rel (%p11) target = $region8
  $region5: #{tpu_custom_call.1} parent=0 // loop_body
    %s15 = ssub.s32 %s10, 1
    %s16 = ssub.s32 %s10, 2
    %s17 = sadd.s32 %s10, 1
    %s18 = ssub.s32 %s10, %s17
    %p19 = scmp.eq.s32.totalorder %s18, 0
    %s21 = sadd.s32 %s20, 1
    %s22 = scalar_select %p19, %s20, %s21
    %p25 = pneg %p19
    %p26 = scmp.eq.s32.totalorder %s10, 1
    %p27 = por %p25, %p26
    %p28 = scmp.ne.s32.totalorder %s20, %s23
    %p29 = scmp.eq.s32.totalorder %s10, 0
    %p30 = por %p28, %p29
    %p31 = scmp.ne.s32.totalorder %s20, %s23
    %p32 = scmp.eq.s32.totalorder %s15, 1
    %p33 = por %p31, %p32
    %p34 = scmp.ne.s32.totalorder %s23, %s24
    %p35 = scmp.eq.s32.totalorder %s15, 0
    %p36 = por %p34, %p35
    %p37 = scmp.ne.s32.totalorder %s23, %s24
    %p38 = scmp.eq.s32.totalorder %s16, 1
    %p39 = por %p37, %p38
    %p41 = scmp.ne.s32.totalorder %s24, %s40
    %p42 = scmp.eq.s32.totalorder %s16, 0
    %p43 = por %p41, %p42
    %s44 = ssub.s32 %s10, %s17
    %p45 = scmp.eq.s32.totalorder %s44, 0
    %s47 = sadd.s32 %s46, 1
    %s48 = scalar_select %p45, %s46, %s47
    %p51 = pneg %p45
    %p52 = scmp.eq.s32.totalorder %s10, 1
    %p53 = por %p51, %p52
    %p54 = scmp.ne.s32.totalorder %s46, %s49
    %p55 = scmp.eq.s32.totalorder %s10, 0
    %p56 = por %p54, %p55
    %p57 = scmp.ne.s32.totalorder %s46, %s49
    %p58 = scmp.eq.s32.totalorder %s15, 1
    %p59 = por %p57, %p58
    %p60 = scmp.ne.s32.totalorder %s49, %s50
    %p61 = scmp.eq.s32.totalorder %s15, 0
    %p62 = por %p60, %p61
    %p63 = scmp.ne.s32.totalorder %s49, %s50
    %p64 = scmp.eq.s32.totalorder %s16, 1
    %p65 = por %p63, %p64
    %p67 = scmp.ne.s32.totalorder %s50, %s66
    %p68 = scmp.eq.s32.totalorder %s16, 0
    %p69 = por %p67, %p68
    %s71 = sadd.s32 %s70, 1
    %p74 = scmp.eq.s32.totalorder %s10, 1
    %p75 = scmp.ne.s32.totalorder %s70, %s72
    %p76 = scmp.eq.s32.totalorder %s10, 0
    %p77 = por %p75, %p76
    %p78 = scmp.ne.s32.totalorder %s70, %s72
    %p79 = scmp.eq.s32.totalorder %s15, 1
    %p80 = por %p78, %p79
    %p81 = scmp.ne.s32.totalorder %s72, %s73
    %p82 = scmp.eq.s32.totalorder %s15, 0
    %p83 = por %p81, %p82
    %p84 = scmp.ne.s32.totalorder %s72, %s73
    %p85 = scmp.eq.s32.totalorder %s16, 1
    %p86 = por %p84, %p85
    %p88 = scmp.ne.s32.totalorder %s73, %s87
    %p89 = scmp.eq.s32.totalorder %s16, 0
    %p90 = por %p88, %p89
    %s92 = sadd.s32 %s91, 1
    %p95 = scmp.eq.s32.totalorder %s10, 1
    %p96 = scmp.ne.s32.totalorder %s91, %s93
    %p97 = scmp.eq.s32.totalorder %s10, 0
    %p98 = por %p96, %p97
    %p99 = scmp.ne.s32.totalorder %s91, %s93
    %p100 = scmp.eq.s32.totalorder %s15, 1
    %p101 = por %p99, %p100
    %p102 = scmp.ne.s32.totalorder %s93, %s94
    %p103 = scmp.eq.s32.totalorder %s15, 0
    %p104 = por %p102, %p103
    %p105 = scmp.ne.s32.totalorder %s93, %s94
    %p106 = scmp.eq.s32.totalorder %s16, 1
    %p107 = por %p105, %p106
    %p109 = scmp.ne.s32.totalorder %s94, %s108
    %p110 = scmp.eq.s32.totalorder %s16, 0
    %p111 = por %p109, %p110
    %s112 = ssub.s32 %s10, %s17
    %p113 = scmp.eq.s32.totalorder %s112, 0
    %s115 = sadd.s32 %s114, 1
    %s116 = scalar_select %p113, %s114, %s115
    %p119 = pneg %p113
    %p120 = scmp.eq.s32.totalorder %s10, 1
    %p121 = por %p119, %p120
    %p122 = scmp.ne.s32.totalorder %s114, %s117
    %p123 = scmp.eq.s32.totalorder %s10, 0
    %p124 = por %p122, %p123
    %p125 = scmp.ne.s32.totalorder %s114, %s117
    %p126 = scmp.eq.s32.totalorder %s15, 1
    %p127 = por %p125, %p126
    %p128 = scmp.ne.s32.totalorder %s117, %s118
    %p129 = scmp.eq.s32.totalorder %s15, 0
    %p130 = por %p128, %p129
    %p131 = scmp.ne.s32.totalorder %s117, %s118
    %p132 = scmp.eq.s32.totalorder %s16, 1
    %p133 = por %p131, %p132
    %p135 = scmp.ne.s32.totalorder %s118, %s134
    %p136 = scmp.eq.s32.totalorder %s16, 0
    %p137 = por %p135, %p136
    %p138 = scmp.le.s32.totalorder 1, %s10
    %p139 = scmp.lt.s32.totalorder %s10, 3
    %p140 = pnand %p138, %p139
    %p141 = pneg %p140
    // Predicated region
    $region9: #{tpu_custom_call.1} parent=5 // pred_check
      _
    $region10: #{tpu_custom_call.1} parent=5 // pred_check_branch
      %143 = sbr.rel (%p140) target = $region12
    $region11: #{tpu_custom_call.1} parent=5 // pred_region
      %s144 = ssub.s32 %s10, 1
      // Predicated region
      $region13: #{tpu_custom_call.1} parent=11 // pred_check
        %p145 = pneg %p83
      $region14: #{tpu_custom_call.1} parent=11 // pred_check_branch
        %147 = sbr.rel (%p145) target = $region16
      $region15: #{tpu_custom_call.1} parent=11 // pred_region
        _
      $region16: #{tpu_custom_call.1} parent=11 // pred_fallthru
        _
      // Predicated region
      $region17: #{tpu_custom_call.1} parent=11 // pred_check
        %p148 = pneg %p104
      $region18: #{tpu_custom_call.1} parent=11 // pred_check_branch
        %150 = sbr.rel (%p148) target = $region20
      $region19: #{tpu_custom_call.1} parent=11 // pred_region
        _
      $region20: #{tpu_custom_call.1} parent=11 // pred_fallthru
        _
    $region12: #{tpu_custom_call.1} parent=5 // pred_fallthru
      _
    %p151 = scmp.lt.s32.totalorder %s10, 2
    // Predicated region
    $region21: #{tpu_custom_call.1} parent=5 // pred_check
      %p152 = pneg %p151
    $region22: #{tpu_custom_call.1} parent=5 // pred_check_branch
      %154 = sbr.rel (%p152) target = $region24
    $region23: #{tpu_custom_call.1} parent=5 // pred_region
      // Predicated region
      $region25: #{tpu_custom_call.1} parent=23 // pred_check
        %p155 = pneg %p30
      $region26: #{tpu_custom_call.1} parent=23 // pred_check_branch
        %157 = sbr.rel (%p155) target = $region28
      $region27: #{tpu_custom_call.1} parent=23 // pred_region
        %p158 = scmp.lt.s32.totalorder %s10, 1
        %s159 = scalar_select %p158, %s10, 1
        %s160 = smul.addr %s159, 8
        %s161 = scalar_lea.vmem %s0, %s160
      $region28: #{tpu_custom_call.1} parent=23 // pred_fallthru
        _
      // Predicated region
      $region29: #{tpu_custom_call.1} parent=23 // pred_check
        %p162 = pneg %p56
      $region30: #{tpu_custom_call.1} parent=23 // pred_check_branch
        %164 = sbr.rel (%p162) target = $region32
      $region31: #{tpu_custom_call.1} parent=23 // pred_region
        %s165 = smul.u32 8, %s10
        %p166 = scmp.lt.s32.totalorder %s165, 15
        %s167 = scalar_select %p166, %s165, 15
        %s168 = smul.addr %s167, 8
        %s169 = scalar_lea.vmem %s1, %s168
        %s170 = smul.u32 8, %s10
      $region32: #{tpu_custom_call.1} parent=23 // pred_fallthru
        _
    $region24: #{tpu_custom_call.1} parent=5 // pred_fallthru
      _
    %p171 = scmp.le.s32.totalorder 1, %s10
    %p172 = scmp.lt.s32.totalorder %s10, 3
    %p173 = pnand %p171, %p172
    %p174 = pneg %p173
    // Predicated region
    $region33: #{tpu_custom_call.1} parent=5 // pred_check
      _
    $region34: #{tpu_custom_call.1} parent=5 // pred_check_branch
      %176 = sbr.rel (%p173) target = $region36
    $region35: #{tpu_custom_call.1} parent=5 // pred_region
      %s177 = ssub.s32 %s10, 1
      %p178 = scmp.lt.s32.totalorder %s15, 1
      %s179 = scalar_select %p178, %s15, 1
      %s180 = smul.addr %s179, 8
      %s181 = scalar_lea.vmem %s0, %s180
      %p182 = pneg %p36
      %p183 = pneg %p33
      %s184 = smul.u32 8, %s15
      %p185 = scmp.lt.s32.totalorder %s184, 15
      %s186 = scalar_select %p185, %s184, 15
      %s187 = smul.addr %s186, 8
      %s188 = scalar_lea.vmem %s1, %s187
      %p189 = pneg %p62
      %p190 = pneg %p59
      %p191 = pneg %p83
      %p192 = pneg %p80
      %p193 = pneg %p104
      %p194 = pneg %p101
      %p195 = pneg %p130
      %p196 = pneg %p127
      %p197 = scmp.lt.s32.totalorder %s15, 1
      %s198 = scalar_select %p197, %s15, 1
      %s199 = smul.addr %s198, 8
      %s200 = scalar_lea.vmem %s4, %s199
      %p201 = scmp.lt.s32.totalorder %s15, 1
      %s202 = scalar_select %p201, %s15, 1
      %s203 = smul.addr %s202, 8
      %s204 = scalar_lea.vmem %s0, %s203
      %s205 = smul.u32 8, %s15
      %p206 = scmp.lt.s32.totalorder %s205, 15
      %s207 = scalar_select %p206, %s205, 15
      %s208 = smul.addr %s207, 8
      %s209 = scalar_lea.vmem %s1, %s208
      %s210 = smul.u32 8, %s15
      %p211 = scmp.lt.s32.totalorder %s15, 1
      %s212 = scalar_select %p211, %s15, 1
      %s213 = smul.addr %s212, 8
      %s214 = scalar_lea.vmem %s4, %s213
      %v215 = vld [vmem:[%s209] sm:$0xff]
      %v216 = vld [vmem:[%s209 + $0x8] sm:$0xff]
      %v217 = vld [vmem:[%s209 + $0x10] sm:$0xff]
      %v218 = vld [vmem:[%s209 + $0x18] sm:$0xff]
      %v219 = vld [vmem:[%s209 + $0x20] sm:$0xff]
      %v220 = vld [vmem:[%s209 + $0x28] sm:$0xff]
      %v221 = vld [vmem:[%s209 + $0x30] sm:$0xff]
      %v222 = vld [vmem:[%s209 + $0x38] sm:$0xff]
      %v223 = vld [vmem:[%s2] sm:$0xff]
      %v224 = vld [vmem:[%s2 + $0x8] sm:$0xff]
      %v225 = vld [vmem:[%s2 + $0x10] sm:$0xff]
      %v226 = vld [vmem:[%s2 + $0x18] sm:$0xff]
      %vm227 = vcmask 261120
      %v229 = vsel %vm227, %v215, 0
      %v232 = vsel %vm227, %v216, 0
      %v235 = vsel %vm227, %v217, 0
      %v238 = vsel %vm227, %v218, 0
      %v241 = vsel %vm227, %v219, 0
      %v244 = vsel %vm227, %v220, 0
      %v247 = vsel %vm227, %v221, 0
      %v250 = vsel %vm227, %v222, 0
      %252 = vmatprep.subr.mxu0 0.0
      %253 = vmatpush1.msra.mxu0 %v223
      %254 = vmatprep.subr.mxu0 0.0
      %255 = vmatpush1.msra.mxu0 %v224
      %256 = vmatprep.subr.mxu0 0.0
      %257 = vmatpush1.msra.mxu0 %v225
      %258 = vmatprep.subr.mxu0 0.0
      %259 = vmatpush1.msra.mxu0 %v226
      %260 = vmatprep.subr.mxu0 0.0
      %261 = vmatpush1.msra.mxu0 0.0
      %262 = vmatprep.subr.mxu0 0.0
      %263 = vmatpush1.msra.mxu0 0.0
      %264 = vmatprep.subr.mxu0 0.0
      %265 = vmatpush1.msra.mxu0 0.0
      %266 = vmatprep.subr.mxu0 0.0
      %267 = vmatpush1.msra.mxu0 0.0
      %268 = vmatprep.subr.mxu0 0.0
      %269 = vmatpush1.msra.mxu0 0.0
      %270 = vmatprep.subr.mxu0 0.0
      %271 = vmatpush1.msra.mxu0 0.0
      %272 = vmatprep.subr.mxu0 0.0
      %273 = vmatpush1.msra.mxu0 0.0
      %274 = vmatprep.subr.mxu0 0.0
      %275 = vmatpush1.msra.mxu0 0.0
      %276 = vmatprep.subr.mxu0 0.0
      %277 = vmatpush1.msra.mxu0 0.0
      %278 = vmatprep.subr.mxu0 0.0
      %279 = vmatpush1.msra.mxu0 0.0
      %280 = vmatprep.subr.mxu0 0.0
      %281 = vmatpush1.msra.mxu0 0.0
      %282 = vmatprep.subr.mxu0 0.0
      %283 = vmatpush1.msra.mxu0 0.0
      %284 = vmatprep.subr.mxu0 0.0
      %285 = vmatpush1.msra.mxu0 0.0
      %286 = vmatprep.subr.mxu0 0.0
      %287 = vmatpush1.msra.mxu0 0.0
      %288 = vmatprep.subr.mxu0 0.0
      %289 = vmatpush1.msra.mxu0 0.0
      %290 = vmatprep.subr.mxu0 0.0
      %291 = vmatpush1.msra.mxu0 0.0
      %292 = vmatprep.subr.mxu0 0.0
      %293 = vmatpush1.msra.mxu0 0.0
      %294 = vmatprep.subr.mxu0 0.0
      %295 = vmatpush1.msra.mxu0 0.0
      %296 = vmatprep.subr.mxu0 0.0
      %297 = vmatpush1.msra.mxu0 0.0
      %298 = vmatprep.subr.mxu0 0.0
      %299 = vmatpush1.msra.mxu0 0.0
      %300 = vmatprep.subr.mxu0 0.0
      %301 = vmatpush1.msra.mxu0 0.0
      %302 = vmatprep.subr.mxu0 0.0
      %303 = vmatpush1.msra.mxu0 0.0
      %304 = vmatprep.subr.mxu0 0.0
      %305 = vmatpush1.msra.mxu0 0.0
      %306 = vmatprep.subr.mxu0 0.0
      %307 = vmatpush1.msra.mxu0 0.0
      %308 = vmatprep.subr.mxu0 0.0
      %309 = vmatpush1.msra.mxu0 0.0
      %310 = vmatprep.subr.mxu0 0.0
      %311 = vmatpush1.msra.mxu0 0.0
      %312 = vmatprep.subr.mxu0 0.0
      %313 = vmatpush1.msra.mxu0 0.0
      %314 = vmatprep.subr.mxu0 0.0
      %315 = vmatpush1.msra.mxu0 0.0
      %316 = vmatprep.mubr.f32.mxu0 0.0
      %317 = vmatmul.mubr.f32.gmra.mrb[0].mxu0 %v229
      %v318 = vpop.f32.mrb[0].mxu0
      %v319 = vadd.f32 0.0, %v318
      %v320 = vpop.f32.mrb[0].mxu0
      %321 = vmatprep.mubr.f32.mxu0 0.0
      %322 = vmatmul.mubr.f32.gmra.mrb[0].mxu0 %v232
      %v323 = vpop.f32.mrb[0].mxu0
      %v324 = vadd.f32 0.0, %v323
      %v325 = vpop.f32.mrb[0].mxu0
      %326 = vmatprep.mubr.f32.mxu0 0.0
      %327 = vmatmul.mubr.f32.gmra.mrb[0].mxu0 %v235
      %v328 = vpop.f32.mrb[0].mxu0
      %v329 = vadd.f32 0.0, %v328
      %v330 = vpop.f32.mrb[0].mxu0
      %331 = vmatprep.mubr.f32.mxu0 0.0
      %332 = vmatmul.mubr.f32.gmra.mrb[0].mxu0 %v238
      %v333 = vpop.f32.mrb[0].mxu0
      %v334 = vadd.f32 0.0, %v333
      %v335 = vpop.f32.mrb[0].mxu0
      %336 = vmatprep.mubr.f32.mxu0 0.0
      %337 = vmatmul.mubr.f32.gmra.mrb[0].mxu0 %v241
      %v338 = vpop.f32.mrb[0].mxu0
      %v339 = vadd.f32 0.0, %v338
      %v340 = vpop.f32.mrb[0].mxu0
      %341 = vmatprep.mubr.f32.mxu0 0.0
      %342 = vmatmul.mubr.f32.gmra.mrb[0].mxu0 %v244
      %v343 = vpop.f32.mrb[0].mxu0
      %v344 = vadd.f32 0.0, %v343
      %v345 = vpop.f32.mrb[0].mxu0
      %346 = vmatprep.mubr.f32.mxu0 0.0
      %347 = vmatmul.mubr.f32.gmra.mrb[0].mxu0 %v247
      %v348 = vpop.f32.mrb[0].mxu0
      %v349 = vadd.f32 0.0, %v348
      %v350 = vpop.f32.mrb[0].mxu0
      %351 = vmatprep.mubr.f32.mxu0 0.0
      %352 = vmatmul.mubr.f32.gmra.mrb[0].mxu0 %v250
      %v353 = vpop.f32.mrb[0].mxu0
      %v354 = vadd.f32 0.0, %v353
      %v355 = vpop.f32.mrb[0].mxu0
      %356 = vdwg.mxu0
      %v357 = vld [vmem:[%s204] sm:$0xff]
      %v359 = vcombine.high %v357, %v357
      %v361 = vunpack.c.l.s4 1966171168
      %v362 = vunpack.c.0.s8 %v361
      %v363 = vlaneseq
      %v364 = vshrl.u32 %v363, 7
      %v365 = vsub.s32 %v362, %v364
      %v366 = vrot.slane %v357, %v365
      %v368 = vunpack.c.l.s4 1966171168
      %v369 = vunpack.c.0.s8 %v368
      %v370 = vlaneseq
      %v371 = vshrl.u32 %v370, 7
      %v372 = vsub.s32 %v369, %v371
      %v373 = vrot.slane %v359, %v372
      %v374 = vcombine.high %v366, %v366
      %v375 = vcombine.high %v373, %v373
      %v377 = vunpack.c.l.s4 1966171168
      %v378 = vunpack.c.0.s8 %v377
      %v379 = vlaneseq
      %v380 = vshrl.u32 %v379, 7
      %v381 = vsub.s32 %v378, %v380
      %v382 = vrot.slane %v366, %v381
      %v384 = vunpack.c.l.s4 1966171168
      %v385 = vunpack.c.0.s8 %v384
      %v386 = vlaneseq
      %v387 = vshrl.u32 %v386, 7
      %v388 = vsub.s32 %v385, %v387
      %v389 = vrot.slane %v373, %v388
      %v391 = vunpack.c.l.s4 1966171168
      %v392 = vunpack.c.0.s8 %v391
      %v393 = vlaneseq
      %v394 = vshrl.u32 %v393, 7
      %v395 = vsub.s32 %v392, %v394
      %v396 = vrot.slane %v374, %v395
      %v398 = vunpack.c.l.s4 1966171168
      %v399 = vunpack.c.0.s8 %v398
      %v400 = vlaneseq
      %v401 = vshrl.u32 %v400, 7
      %v402 = vsub.s32 %v399, %v401
      %v403 = vrot.slane %v375, %v402
      %v404 = vcombine.high %v382, %v382
      %v405 = vcombine.high %v389, %v389
      %v406 = vcombine.high %v396, %v396
      %v407 = vcombine.high %v403, %v403
      %v408 = vlaneseq
      %v409 = vshrl.u32 %v408, 7
      %v410 = vsub.s32 0, %v409
      %v411 = vrot.slane %v382, %v410
      %v412 = vlaneseq
      %v413 = vshrl.u32 %v412, 7
      %v414 = vsub.s32 0, %v413
      %v415 = vrot.slane %v396, %v414
      %v416 = vlaneseq
      %v417 = vshrl.u32 %v416, 7
      %v418 = vsub.s32 0, %v417
      %v419 = vrot.slane %v404, %v418
      %v420 = vlaneseq
      %v421 = vshrl.u32 %v420, 7
      %v422 = vsub.s32 0, %v421
      %v423 = vrot.slane %v406, %v422
      %v424 = vlaneseq
      %v425 = vshrl.u32 %v424, 7
      %v426 = vsub.s32 0, %v425
      %v427 = vrot.slane %v389, %v426
      %v428 = vlaneseq
      %v429 = vshrl.u32 %v428, 7
      %v430 = vsub.s32 0, %v429
      %v431 = vrot.slane %v403, %v430
      %v432 = vlaneseq
      %v433 = vshrl.u32 %v432, 7
      %v434 = vsub.s32 0, %v433
      %v435 = vrot.slane %v405, %v434
      %v436 = vlaneseq
      %v437 = vshrl.u32 %v436, 7
      %v438 = vsub.s32 0, %v437
      %v439 = vrot.slane %v407, %v438
      %v448 = vadd.f32 %v319, %v411
      %v449 = vadd.f32 %v324, %v415
      %v450 = vadd.f32 %v329, %v419
      %v451 = vadd.f32 %v334, %v423
      %v452 = vadd.f32 %v339, %v427
      %v453 = vadd.f32 %v344, %v431
      %v454 = vadd.f32 %v349, %v435
      %v455 = vadd.f32 %v354, %v439
      %v456 = vtanh.pop %v448
      %v457 = vtanh.pop %v449
      %v458 = vtanh.pop %v450
      %v459 = vtanh.pop %v451
      %v460 = vtanh.pop %v452
      %v461 = vtanh.pop %v453
      %v462 = vtanh.pop %v454
      %v463 = vtanh.pop %v455
      %v464 = vld [vmem:[%s3] sm:$0x1]
      %v466 = vlaneseq
      %v467 = vshrl.u32 %v466, 7
      %v468 = vsub.s32 0, %v467
      %v469 = vrot.slane %v464, %v468
      %v471 = vmul.f32 %v456, %v469
      %v472 = vmul.f32 %v457, %v469
      %v473 = vmul.f32 %v458, %v469
      %v474 = vmul.f32 %v459, %v469
      %v475 = vmul.f32 %v460, %v469
      %v476 = vmul.f32 %v461, %v469
      %v477 = vmul.f32 %v462, %v469
      %v478 = vmul.f32 %v463, %v469
      %v479 = vsel %vm227, %v471, 0.0
      %480 = vadd.xlane.f32.xlu0 %v479
      %v481 = vpop.xlane.xlu0 %480
      %v482 = vsel %vm227, %v472, 0.0
      %483 = vadd.xlane.f32.xlu0 %v482
      %v484 = vpop.xlane.xlu0 %483
      %v485 = vsel %vm227, %v473, 0.0
      %486 = vadd.xlane.f32.xlu0 %v485
      %v487 = vpop.xlane.xlu0 %486
      %v488 = vsel %vm227, %v474, 0.0
      %489 = vadd.xlane.f32.xlu0 %v488
      %v490 = vpop.xlane.xlu0 %489
      %v491 = vsel %vm227, %v475, 0.0
      %492 = vadd.xlane.f32.xlu0 %v491
      %v493 = vpop.xlane.xlu0 %492
      %v494 = vsel %vm227, %v476, 0.0
      %495 = vadd.xlane.f32.xlu0 %v494
      %v496 = vpop.xlane.xlu0 %495
      %v497 = vsel %vm227, %v477, 0.0
      %498 = vadd.xlane.f32.xlu0 %v497
      %v499 = vpop.xlane.xlu0 %498
      %v500 = vsel %vm227, %v478, 0.0
      %501 = vadd.xlane.f32.xlu0 %v500
      %v502 = vpop.xlane.xlu0 %501
      %v511 = vlaneseq
      %v512 = vand.u32 %v511, 127
      %v513 = vlaneseq
      %v514 = vshrl.u32 %v513, 7
      %v515 = vsub.s32 %v512, %v514
      %v516 = vrot.slane %v481, %v515
      %v517 = vlaneseq
      %v518 = vshrl.u32 %v517, 7
      %v519 = vsub.s32 %v512, %v518
      %v520 = vrot.slane %v484, %v519
      %v521 = vlaneseq
      %v522 = vshrl.u32 %v521, 7
      %v523 = vsub.s32 %v512, %v522
      %v524 = vrot.slane %v487, %v523
      %v525 = vlaneseq
      %v526 = vshrl.u32 %v525, 7
      %v527 = vsub.s32 %v512, %v526
      %v528 = vrot.slane %v490, %v527
      %v529 = vlaneseq
      %v530 = vshrl.u32 %v529, 7
      %v531 = vsub.s32 %v512, %v530
      %v532 = vrot.slane %v493, %v531
      %v533 = vlaneseq
      %v534 = vshrl.u32 %v533, 7
      %v535 = vsub.s32 %v512, %v534
      %v536 = vrot.slane %v496, %v535
      %v537 = vlaneseq
      %v538 = vshrl.u32 %v537, 7
      %v539 = vsub.s32 %v512, %v538
      %v540 = vrot.slane %v499, %v539
      %v541 = vlaneseq
      %v542 = vshrl.u32 %v541, 7
      %v543 = vsub.s32 %v512, %v542
      %v544 = vrot.slane %v502, %v543
      %vm545 = vcmask 1041409
      %v546 = vsel %vm545, %v520, %v516
      %vm547 = vcmask 1042434
      %v548 = vsel %vm547, %v524, %v546
      %vm549 = vcmask 1043459
      %v550 = vsel %vm549, %v528, %v548
      %vm551 = vcmask 1044484
      %v552 = vsel %vm551, %v532, %v550
      %vm553 = vcmask 1045509
      %v554 = vsel %vm553, %v536, %v552
      %vm555 = vcmask 1046534
      %v556 = vsel %vm555, %v540, %v554
      %vm557 = vcmask 1047559
      %v558 = vsel %vm557, %v544, %v556
      %vm560 = vcmask 64512
      %v561 = vsel %vm560, %v558, -inf
      %562 = vmax.xlane.f32.xlu0 %v561
      %v563 = vpop.xlane.xlu0 %562
      %v565 = vlaneseq
      %v566 = vshrl.u32 %v565, 7
      %v567 = vsub.s32 0, %v566
      %v568 = vrot.slane %v563, %v567
      %v569 = vlaneseq
      %v570 = vshrl.u32 %v569, 7
      %v571 = vsub.s32 1, %v570
      %v572 = vrot.slane %v563, %v571
      %v573 = vlaneseq
      %v574 = vshrl.u32 %v573, 7
      %v575 = vsub.s32 2, %v574
      %v576 = vrot.slane %v563, %v575
      %v577 = vlaneseq
      %v578 = vshrl.u32 %v577, 7
      %v579 = vsub.s32 3, %v578
      %v580 = vrot.slane %v563, %v579
      %v581 = vlaneseq
      %v582 = vshrl.u32 %v581, 7
      %v583 = vsub.s32 4, %v582
      %v584 = vrot.slane %v563, %v583
      %v585 = vlaneseq
      %v586 = vshrl.u32 %v585, 7
      %v587 = vsub.s32 5, %v586
      %v588 = vrot.slane %v563, %v587
      %v589 = vlaneseq
      %v590 = vshrl.u32 %v589, 7
      %v591 = vsub.s32 6, %v590
      %v592 = vrot.slane %v563, %v591
      %v593 = vlaneseq
      %v594 = vshrl.u32 %v593, 7
      %v595 = vsub.s32 7, %v594
      %v596 = vrot.slane %v563, %v595
      %v605 = vsub.f32 %v481, %v568
      %v606 = vsub.f32 %v484, %v572
      %v607 = vsub.f32 %v487, %v576
      %v608 = vsub.f32 %v490, %v580
      %v609 = vsub.f32 %v493, %v584
      %v610 = vsub.f32 %v496, %v588
      %v611 = vsub.f32 %v499, %v592
      %v612 = vsub.f32 %v502, %v596
      %v613 = vmul.f32 %v605, 1.442695
      %v614 = vpow.pop %v613
      %v615 = vmul.f32 %v606, 1.442695
      %v616 = vpow.pop %v615
      %v617 = vmul.f32 %v607, 1.442695
      %v618 = vpow.pop %v617
      %v619 = vmul.f32 %v608, 1.442695
      %v620 = vpow.pop %v619
      %v621 = vmul.f32 %v609, 1.442695
      %v622 = vpow.pop %v621
      %v623 = vmul.f32 %v610, 1.442695
      %v624 = vpow.pop %v623
      %v625 = vmul.f32 %v611, 1.442695
      %v626 = vpow.pop %v625
      %v627 = vmul.f32 %v612, 1.442695
      %v628 = vpow.pop %v627
      %637 = vset.pattern.permute.xlu0 0
      %638 = vperm.xlu0 %637, %v614
      %v639 = vpop.permute.xlu0 %638
      %640 = vset.pattern.permute.xlu0 0
      %641 = vperm.xlu0 %640, %v616
      %v642 = vpop.permute.xlu0 %641
      %643 = vset.pattern.permute.xlu0 0
      %644 = vperm.xlu0 %643, %v618
      %v645 = vpop.permute.xlu0 %644
      %646 = vset.pattern.permute.xlu0 0
      %647 = vperm.xlu0 %646, %v620
      %v648 = vpop.permute.xlu0 %647
      %649 = vset.pattern.permute.xlu0 0
      %650 = vperm.xlu0 %649, %v622
      %v651 = vpop.permute.xlu0 %650
      %652 = vset.pattern.permute.xlu0 0
      %653 = vperm.xlu0 %652, %v624
      %v654 = vpop.permute.xlu0 %653
      %655 = vset.pattern.permute.xlu0 0
      %656 = vperm.xlu0 %655, %v626
      %v657 = vpop.permute.xlu0 %656
      %658 = vset.pattern.permute.xlu0 0
      %659 = vperm.xlu0 %658, %v628
      %v660 = vpop.permute.xlu0 %659
      %v661 = vlaneseq
      %v662 = vshrl.u32 %v661, 7
      %v663 = vsub.s32 %v512, %v662
      %v664 = vrot.slane %v639, %v663
      %v665 = vlaneseq
      %v666 = vshrl.u32 %v665, 7
      %v667 = vsub.s32 %v512, %v666
      %v668 = vrot.slane %v642, %v667
      %v669 = vlaneseq
      %v670 = vshrl.u32 %v669, 7
      %v671 = vsub.s32 %v512, %v670
      %v672 = vrot.slane %v645, %v671
      %v673 = vlaneseq
      %v674 = vshrl.u32 %v673, 7
      %v675 = vsub.s32 %v512, %v674
      %v676 = vrot.slane %v648, %v675
      %v677 = vlaneseq
      %v678 = vshrl.u32 %v677, 7
      %v679 = vsub.s32 %v512, %v678
      %v680 = vrot.slane %v651, %v679
      %v681 = vlaneseq
      %v682 = vshrl.u32 %v681, 7
      %v683 = vsub.s32 %v512, %v682
      %v684 = vrot.slane %v654, %v683
      %v685 = vlaneseq
      %v686 = vshrl.u32 %v685, 7
      %v687 = vsub.s32 %v512, %v686
      %v688 = vrot.slane %v657, %v687
      %v689 = vlaneseq
      %v690 = vshrl.u32 %v689, 7
      %v691 = vsub.s32 %v512, %v690
      %v692 = vrot.slane %v660, %v691
      %v693 = vsel %vm545, %v668, %v664
      %v694 = vsel %vm547, %v672, %v693
      %v695 = vsel %vm549, %v676, %v694
      %v696 = vsel %vm551, %v680, %v695
      %v697 = vsel %vm553, %v684, %v696
      %v698 = vsel %vm555, %v688, %v697
      %v699 = vsel %vm557, %v692, %v698
      %v701 = vsel %vm560, %v699, 0.0
      %702 = vadd.xlane.f32.xlu0 %v701
      %v703 = vpop.xlane.xlu0 %702
      %v705 = vlaneseq
      %v706 = vshrl.u32 %v705, 7
      %v707 = vsub.s32 0, %v706
      %v708 = vrot.slane %v703, %v707
      %v709 = vlaneseq
      %v710 = vshrl.u32 %v709, 7
      %v711 = vsub.s32 1, %v710
      %v712 = vrot.slane %v703, %v711
      %v713 = vlaneseq
      %v714 = vshrl.u32 %v713, 7
      %v715 = vsub.s32 2, %v714
      %v716 = vrot.slane %v703, %v715
      %v717 = vlaneseq
      %v718 = vshrl.u32 %v717, 7
      %v719 = vsub.s32 3, %v718
      %v720 = vrot.slane %v703, %v719
      %v721 = vlaneseq
      %v722 = vshrl.u32 %v721, 7
      %v723 = vsub.s32 4, %v722
      %v724 = vrot.slane %v703, %v723
      %v725 = vlaneseq
      %v726 = vshrl.u32 %v725, 7
      %v727 = vsub.s32 5, %v726
      %v728 = vrot.slane %v703, %v727
      %v729 = vlaneseq
      %v730 = vshrl.u32 %v729, 7
      %v731 = vsub.s32 6, %v730
      %v732 = vrot.slane %v703, %v731
      %v733 = vlaneseq
      %v734 = vshrl.u32 %v733, 7
      %v735 = vsub.s32 7, %v734
      %v736 = vrot.slane %v703, %v735
      %v745 = vrcp.pop %v708
      %v746 = vmul.f32 %v614, %v745
      %v747 = vrcp.pop %v712
      %v748 = vmul.f32 %v616, %v747
      %v749 = vrcp.pop %v716
      %v750 = vmul.f32 %v618, %v749
      %v751 = vrcp.pop %v720
      %v752 = vmul.f32 %v620, %v751
      %v753 = vrcp.pop %v724
      %v754 = vmul.f32 %v622, %v753
      %v755 = vrcp.pop %v728
      %v756 = vmul.f32 %v624, %v755
      %v757 = vrcp.pop %v732
      %v758 = vmul.f32 %v626, %v757
      %v759 = vrcp.pop %v736
      %v760 = vmul.f32 %v628, %v759
      %769 = vset.pattern.permute.xlu0 0
      %770 = vperm.xlu0 %769, %v746
      %v771 = vpop.permute.xlu0 %770
      %772 = vset.pattern.permute.xlu0 0
      %773 = vperm.xlu0 %772, %v748
      %v774 = vpop.permute.xlu0 %773
      %775 = vset.pattern.permute.xlu0 0
      %776 = vperm.xlu0 %775, %v750
      %v777 = vpop.permute.xlu0 %776
      %778 = vset.pattern.permute.xlu0 0
      %779 = vperm.xlu0 %778, %v752
      %v780 = vpop.permute.xlu0 %779
      %781 = vset.pattern.permute.xlu0 0
      %782 = vperm.xlu0 %781, %v754
      %v783 = vpop.permute.xlu0 %782
      %784 = vset.pattern.permute.xlu0 0
      %785 = vperm.xlu0 %784, %v756
      %v786 = vpop.permute.xlu0 %785
      %787 = vset.pattern.permute.xlu0 0
      %788 = vperm.xlu0 %787, %v758
      %v789 = vpop.permute.xlu0 %788
      %790 = vset.pattern.permute.xlu0 0
      %791 = vperm.xlu0 %790, %v760
      %v792 = vpop.permute.xlu0 %791
      %v793 = vlaneseq
      %v794 = vshrl.u32 %v793, 7
      %v795 = vsub.s32 %v512, %v794
      %v796 = vrot.slane %v771, %v795
      %v797 = vlaneseq
      %v798 = vshrl.u32 %v797, 7
      %v799 = vsub.s32 %v512, %v798
      %v800 = vrot.slane %v774, %v799
      %v801 = vlaneseq
      %v802 = vshrl.u32 %v801, 7
      %v803 = vsub.s32 %v512, %v802
      %v804 = vrot.slane %v777, %v803
      %v805 = vlaneseq
      %v806 = vshrl.u32 %v805, 7
      %v807 = vsub.s32 %v512, %v806
      %v808 = vrot.slane %v780, %v807
      %v809 = vlaneseq
      %v810 = vshrl.u32 %v809, 7
      %v811 = vsub.s32 %v512, %v810
      %v812 = vrot.slane %v783, %v811
      %v813 = vlaneseq
      %v814 = vshrl.u32 %v813, 7
      %v815 = vsub.s32 %v512, %v814
      %v816 = vrot.slane %v786, %v815
      %v817 = vlaneseq
      %v818 = vshrl.u32 %v817, 7
      %v819 = vsub.s32 %v512, %v818
      %v820 = vrot.slane %v789, %v819
      %v821 = vlaneseq
      %v822 = vshrl.u32 %v821, 7
      %v823 = vsub.s32 %v512, %v822
      %v824 = vrot.slane %v792, %v823
      %v825 = vsel %vm545, %v800, %v796
      %v826 = vsel %vm547, %v804, %v825
      %v827 = vsel %vm549, %v808, %v826
      %v828 = vsel %vm551, %v812, %v827
      %v829 = vsel %vm553, %v816, %v828
      %v830 = vsel %vm555, %v820, %v829
      %v831 = vsel %vm557, %v824, %v830
      %833 = vst.msk [vmem:[%s214] sm:$0xff] %vm560, %v831
      %p834 = scmp.lt.s32.totalorder %s15, 1
      %s835 = scalar_select %p834, %s15, 1
      %s836 = smul.addr %s835, 8
      %s837 = scalar_lea.vmem %s4, %s836
      // Predicated region
      $region37: #{tpu_custom_call.1} parent=35 // pred_check
        %p838 = pneg %p127
      $region38: #{tpu_custom_call.1} parent=35 // pred_check_branch
        %840 = sbr.rel (%p838) target = $region40
      $region39: #{tpu_custom_call.1} parent=35 // pred_region
        _
      $region40: #{tpu_custom_call.1} parent=35 // pred_fallthru
        _
    $region36: #{tpu_custom_call.1} parent=5 // pred_fallthru
      _
    %p841 = scmp.le.s32.totalorder 2, %s10
    // Predicated region
    $region41: #{tpu_custom_call.1} parent=5 // pred_check
      %p842 = pneg %p841
    $region42: #{tpu_custom_call.1} parent=5 // pred_check_branch
      %844 = sbr.rel (%p842) target = $region44
    $region43: #{tpu_custom_call.1} parent=5 // pred_region
      %s845 = ssub.s32 %s10, 2
      // Predicated region
      $region45: #{tpu_custom_call.1} parent=43 // pred_check
        %p846 = pneg %p133
      $region46: #{tpu_custom_call.1} parent=43 // pred_check_branch
        %848 = sbr.rel (%p846) target = $region48
      $region47: #{tpu_custom_call.1} parent=43 // pred_region
        %p849 = scmp.lt.s32.totalorder %s16, 1
        %s850 = scalar_select %p849, %s16, 1
        %s851 = smul.addr %s850, 8
        %s852 = scalar_lea.vmem %s4, %s851
      $region48: #{tpu_custom_call.1} parent=43 // pred_fallthru
        _
    $region44: #{tpu_custom_call.1} parent=5 // pred_fallthru
      _
  $region6: #{tpu_custom_call.1} parent=0 // loop_footer
    %s14 = sadd.s32 1, %s10
  $region7: #{tpu_custom_call.1} parent=0 // loop_footer_branch
    %9 = sbr.rel target = $region3
  $region8: #{tpu_custom_call.1} parent=0 // loop_exit
    _

</llo_original>
